<compile_context>
chip_gen: v6e
topology: v6e:2x2x1
jax: 0.10.0
libtpu: 0.0.40
codegen_flags: <defaults>
</compile_context>

<pallas_src>
import jax
import jax.numpy as jnp
from jax import lax
from jax.experimental import pallas as pl
from jax.experimental.pallas import tpu as pltpu


def _association_head_kernel(x_ref, w_ref, b_ref, o_ref, acc_ref):
    # x_ref: (tm, tk)  w_ref: (tk, E)  b_ref: (1, E)
    # o_ref: (tm, E)   acc_ref: (tm, E) f32 scratch, resident across K steps.
    k = pl.program_id(1)

    @pl.when(k == 0)
    def _init():
        acc_ref[...] = jnp.zeros_like(acc_ref)

    # Partial matmul for this K-chunk; MXU accumulates in f32.
    acc_ref[...] += jnp.dot(x_ref[...], w_ref[...],
                            preferred_element_type=jnp.float32)

    @pl.when(k == pl.num_programs(1) - 1)
    def _finalize():
        y = acc_ref[...] + b_ref[...].astype(jnp.float32)
        # L2 normalize along dim=1, torch semantics: y / max(||y||_2, 1e-12).
        sumsq = jnp.sum(y * y, axis=-1, keepdims=True)
        inv = lax.rsqrt(jnp.maximum(sumsq, jnp.float32(1e-24)))
        o_ref[...] = (y * inv).astype(o_ref.dtype)


def _round_up(v, m):
    return ((v + m - 1) // m) * m


def _pick_tile(full, candidates):
    """Largest candidate that evenly divides `full` (full is pre-aligned)."""
    for c in candidates:
        if c <= full and full % c == 0:
            return c
    return full


def association_head_forward(x_nchw, weight_kxe, bias):
    """AssociationHead forward.

    Args:
      x_nchw:     (N, C, roi, roi) activations.
      weight_kxe: (K, E) weight, pre-transposed once at param-prep time
                  (torch stores (E, K); transpose it OUTSIDE the hot path).
      bias:       (E,) bias.
    Returns:
      (N, E) row-wise L2-normalized embeddings (dtype follows inputs).
    """
    n = x_nchw.shape[0]
    k = x_nchw.shape[1] * x_nchw.shape[2] * x_nchw.shape[3]
    e = weight_kxe.shape[1]
    assert weight_kxe.shape[0] == k and bias.shape == (e,)

    out_dtype = jnp.result_type(x_nchw.dtype, weight_kxe.dtype)

    # Row-major flatten, identical to torch's x.view(-1, C*H*W).
    x_flat = x_nchw.reshape(n, k)
    b2d = bias.reshape(1, e)

    # Align N to 8 sublanes and K to 128 lanes, then pick the largest tile
    # that divides the aligned extent.  Zero-padding is exact: padded K
    # columns of x meet zero weight rows; padded N rows normalize to zero.
    n_pad = _round_up(n, 8)
    k_pad = _round_up(k, 128)
    tm = _pick_tile(n_pad, (256, 128, 64, 32, 16, 8))      # rows per MXU pass
    tk = _pick_tile(k_pad, (2048, 1024, 512, 256, 128))    # reduction chunk
    # TODO(synk): tile E as a third grid axis if embedding_dim ever grows far
    # beyond a few hundred lanes; at E=128 it stays a single output block.

    if n_pad != n or k_pad != k:
        x_flat = jnp.pad(x_flat, ((0, n_pad - n), (0, k_pad - k)))
    if k_pad != k:
        weight_kxe = jnp.pad(weight_kxe, ((0, k_pad - k), (0, 0)))

    grid = (n_pad // tm, k_pad // tk)

    # Explicit VMEM budget: double-buffered inputs + output + f32 accumulator,
    # with 2x headroom.  Keeps the same tiling safe on v7x's 64 MiB VMEM.
    est = (2 * (tm * tk * x_flat.dtype.itemsize
                + tk * e * weight_kxe.dtype.itemsize
                + e * bias.dtype.itemsize)
           + 2 * tm * e * jnp.dtype(out_dtype).itemsize   # output block
           + tm * e * 4)                                  # accumulator scratch
    vmem_limit = int(min(max(2 * est, 16 * 1024 * 1024), 100 * 1024 * 1024))

    out = pl.pallas_call(
        _association_head_kernel,
        out_shape=jax.ShapeDtypeStruct((n_pad, e), out_dtype),
        grid_spec=pltpu.PrefetchScalarGridSpec(
            num_scalar_prefetch=0,
            grid=grid,
            in_specs=[
                pl.BlockSpec((tm, tk), lambda i, kk: (i, kk)),   # activations
                pl.BlockSpec((tk, e), lambda i, kk: (kk, 0)),    # weight (K,E)
                pl.BlockSpec((1, e), lambda i, kk: (0, 0)),      # bias
            ],
            out_specs=pl.BlockSpec((tm, e), lambda i, kk: (i, 0)),
            scratch_shapes=[pltpu.VMEM((tm, e), jnp.float32)],
        ),
        compiler_params=pltpu.CompilerParams(
            dimension_semantics=("parallel", "arbitrary"),
            vmem_limit_bytes=vmem_limit),
    )(x_flat, weight_kxe, b2d)

    return out[:n] if n_pad != n else out


def make_association_head_params(roi_size, input_depth, embedding_dim, key):
    """Deterministic synthetic params matching nn.Linear(K, E).

    Returns (weight_torch (E,K), weight_kxe (K,E), bias (E,)).  The (K,E)
    weight is produced once here so the forward path never pays a transpose.
    """
    k_in = input_depth * roi_size * roi_size
    kw, kb = jax.random.split(key)
    bound = 1.0 / (k_in ** 0.5)  # same bound family as torch Linear default
    weight_torch = jax.random.uniform(kw, (embedding_dim, k_in), jnp.float32,
                                      minval=-bound, maxval=bound)
    bias = jax.random.uniform(kb, (embedding_dim,), jnp.float32,
                              minval=-bound, maxval=bound)
    weight_kxe = jnp.transpose(weight_torch)   # one-time (E,K) -> (K,E)
    return weight_torch, weight_kxe, bias


if __name__ == "__main__":
    # Small shapes consistent with the module: N=2, C=4, roi_size=16, E=128.
    roi_size = 16
    input_depth = 4
    embedding_dim = 128
    batch = 2

    key = jax.random.PRNGKey(0)
    kx, kp = jax.random.split(key)

    x = jax.random.normal(kx, (batch, input_depth, roi_size, roi_size),
                          jnp.float32)
    weight_torch, weight_kxe, bias = make_association_head_params(
        roi_size, input_depth, embedding_dim, kp)

    out = association_head_forward(x, weight_kxe, bias)
    out = jax.block_until_ready(out)

    # Sanity check against a pure-JAX reference with torch semantics.
    x_flat = x.reshape(batch, -1)
    ref = x_flat @ weight_torch.T + bias
    ref = ref / jnp.maximum(
        jnp.sqrt(jnp.sum(ref * ref, axis=1, keepdims=True)), 1e-12)
    assert out.shape == (batch, embedding_dim)
    assert jnp.allclose(out, ref, atol=1e-5, rtol=1e-5)

    print("KERNEL_OK")
</pallas_src>

<mosaic_0001>
module attributes {stable_mosaic.version = 11 : i64} {
  func.func @_association_head_kernel(%arg0: i32, %arg1: i32, %arg2: memref<8x1024xf32, #tpu.memory_space<vmem>>, %arg3: memref<1024x128xf32, #tpu.memory_space<vmem>>, %arg4: memref<1x128xf32, #tpu.memory_space<vmem>>, %arg5: memref<8x128xf32, #tpu.memory_space<vmem>>, %arg6: memref<8x128xf32, #tpu.memory_space<vmem>>) attributes {dimension_semantics = [#tpu.dimension_semantics<parallel>, #tpu.dimension_semantics<arbitrary>], iteration_bounds = array<i64: 1, 1>, scalar_prefetch = 0 : i64, scratch_operands = 1 : i64, tpu.core_type = #tpu.core_type<tc>, window_params = [{transform_indices = @transform_0, window_bounds = array<i64: 8, 1024>}, {transform_indices = @transform_1, window_bounds = array<i64: 1024, 128>}, {pipeline_mode = #tpu.pipeline_mode<synchronous>, transform_indices = @transform_2, window_bounds = array<i64: 1, 128>}, {transform_indices = @transform_3, window_bounds = array<i64: 8, 128>}]} {
    %c0_i32 = arith.constant 0 : i32
    %0 = arith.cmpi eq, %arg1, %c0_i32 : i32
    %1 = arith.extui %0 : i1 to i32
    %c0_i32_0 = arith.constant 0 : i32
    %2 = arith.cmpi ne, %1, %c0_i32_0 : i32
    scf.if %2 {
      %cst_10 = arith.constant 0.000000e+00 : f32
      %12 = vector.broadcast %cst_10 : f32 to vector<8x128xf32>
      %c0_11 = arith.constant 0 : index
      %c0_12 = arith.constant 0 : index
      %13 = vector.load %arg6[%c0_11, %c0_12] : memref<8x128xf32, #tpu.memory_space<vmem>>, vector<8x128xf32>
      tpu.vector_store %arg6[%c0_11, %c0_12], %12 {strides = array<i32>} : memref<8x128xf32, #tpu.memory_space<vmem>>, vector<8x128xf32>,
    } else {
    }
    %c0 = arith.constant 0 : index
    %c0_1 = arith.constant 0 : index
    %3 = vector.load %arg6[%c0, %c0_1] : memref<8x128xf32, #tpu.memory_space<vmem>>, vector<8x128xf32>
    %c0_2 = arith.constant 0 : index
    %c0_3 = arith.constant 0 : index
    %4 = vector.load %arg2[%c0_2, %c0_3] : memref<8x1024xf32, #tpu.memory_space<vmem>>, vector<8x1024xf32>
    %c0_4 = arith.constant 0 : index
    %c0_5 = arith.constant 0 : index
    %5 = vector.load %arg3[%c0_4, %c0_5] : memref<1024x128xf32, #tpu.memory_space<vmem>>, vector<1024x128xf32>
    %cst = arith.constant dense<0.000000e+00> : vector<8x128xf32>
    %6 = tpu.matmul %4, %5, %cst {dimension_numbers = #tpu.dot_dimension_numbers<[1], [0], [0], [1], [0, 0, 1, 1], [], []>} : vector<8x1024xf32>, vector<1024x128xf32>, vector<8x128xf32> -> vector<8x128xf32>
    %7 = arith.addf %3, %6 : vector<8x128xf32>
    %c0_6 = arith.constant 0 : index
    %c0_7 = arith.constant 0 : index
    %8 = vector.load %arg6[%c0_6, %c0_7] : memref<8x128xf32, #tpu.memory_space<vmem>>, vector<8x128xf32>
    tpu.vector_store %arg6[%c0_6, %c0_7], %7 {strides = array<i32>} : memref<8x128xf32, #tpu.memory_space<vmem>>, vector<8x128xf32>,
    %c0_i32_8 = arith.constant 0 : i32
    %9 = arith.cmpi eq, %arg1, %c0_i32_8 : i32
    %10 = arith.extui %9 : i1 to i32
    %c0_i32_9 = arith.constant 0 : i32
    %11 = arith.cmpi ne, %10, %c0_i32_9 : i32
    scf.if %11 {
      %c0_10 = arith.constant 0 : index
      %c0_11 = arith.constant 0 : index
      %12 = vector.load %arg6[%c0_10, %c0_11] : memref<8x128xf32, #tpu.memory_space<vmem>>, vector<8x128xf32>
      %c0_12 = arith.constant 0 : index
      %c0_13 = arith.constant 0 : index
      %13 = vector.load %arg4[%c0_12, %c0_13] : memref<1x128xf32, #tpu.memory_space<vmem>>, vector<1x128xf32>
      %14 = vector.broadcast %13 : vector<1x128xf32> to vector<8x128xf32>
      %15 = arith.addf %12, %14 : vector<8x128xf32>
      %16 = arith.mulf %15, %15 : vector<8x128xf32>
      %cst_14 = arith.constant dense<0.000000e+00> : vector<8xf32>
      %17 = vector.multi_reduction <add>, %16, %cst_14 [1] : vector<8x128xf32> to vector<8xf32>
      %18 = vector.shape_cast %17 : vector<8xf32> to vector<8x1xf32>
      %cst_15 = arith.constant 1.000000e-24 : f32
      %19 = vector.broadcast %cst_15 : f32 to vector<8x1xf32>
      %20 = arith.maximumf %18, %19 : vector<8x1xf32>
      %21 = math.rsqrt %20 : vector<8x1xf32>
      %22 = vector.broadcast %21 : vector<8x1xf32> to vector<8x128xf32>
      %23 = arith.mulf %15, %22 : vector<8x128xf32>
      %c0_16 = arith.constant 0 : index
      %c0_17 = arith.constant 0 : index
      %24 = vector.load %arg5[%c0_16, %c0_17] : memref<8x128xf32, #tpu.memory_space<vmem>>, vector<8x128xf32>
      tpu.vector_store %arg5[%c0_16, %c0_17], %23 {strides = array<i32>} : memref<8x128xf32, #tpu.memory_space<vmem>>, vector<8x128xf32>,
    } else {
    }
    return
  }
  func.func @transform_0(%arg0: i32, %arg1: i32) -> (i32, i32) {
    %c0_i32 = arith.constant 0 : i32
    return %arg0, %arg1 : i32, i32
  }
  func.func @transform_1(%arg0: i32, %arg1: i32) -> (i32, i32) {
    %c0_i32 = arith.constant 0 : i32
    %c0_i32_0 = arith.constant 0 : i32
    return %arg1, %c0_i32 : i32, i32
  }
  func.func @transform_2(%arg0: i32, %arg1: i32) -> (i32, i32) {
    %c0_i32 = arith.constant 0 : i32
    %c0_i32_0 = arith.constant 0 : i32
    %c0_i32_1 = arith.constant 0 : i32
    return %c0_i32, %c0_i32_0 : i32, i32
  }
  func.func @transform_3(%arg0: i32, %arg1: i32) -> (i32, i32) {
    %c0_i32 = arith.constant 0 : i32
    %c0_i32_0 = arith.constant 0 : i32
    return %arg0, %c0_i32 : i32, i32
  }
}

</mosaic_0001>

<llo_original>
// kernel: tpu_custom_call.1
$region0: #{tpu_custom_call.1}
  #allocation0 [shape = 'u32[]', space=smem, size = 0x4, offset = 0x4, fixed_abs, tag = 'smem constant byte address 0x4 - core index']
  #allocation1 [shape = 'u32[144,128]{1,0:T(1,128)}', space=vmem, size = 0x12000, scoped, tag = 'internal scratch']
  #allocation2 [shape = 'f32[8,128]{1,0:T(8,128)}', space=vmem, size = 0x1000, scoped, tag = 'scratch operand']
  %s0 = inlined_call_operand.hbm [shape: f32[8,1024], index: 0, kind: input, shape index: {}]
  %s1 = inlined_call_operand.hbm [shape: f32[1024,128], index: 1, kind: input, shape index: {}]
  %s2 = inlined_call_operand.vmem [shape: f32[1,128], index: 2, kind: input, shape index: {}]
  %s3 = inlined_call_operand.hbm [shape: f32[8,128], index: 3, kind: output, shape index: {}]
  %s4 = sld [smem:[#allocation0]]
  $region38: #{tpu_custom_call.1} parent=0
    _
  %s6 = ssub.s32 1, %s4
  %s7 = scalar_select 0, %s6, %s4
  $region1: #{tpu_custom_call.1} parent=0
    #allocation3 [shape = 'u8[32768]{0}', space=vmem, size = 0x8000, scoped, tag = 'input window, operand 0, single buffered']
    #allocation4 [shape = 's32[1]{0}', space=sflag, size = 0x4, scoped, tag = 'scoped memory for tpu_custom_call.1']
    #allocation5 [shape = 's32[1]{0}', space=sflag, size = 0x4, scoped, tag = 'scoped memory for tpu_custom_call.1']
    #allocation6 [shape = 'u8[524288]{0}', space=vmem, size = 0x80000, scoped, tag = 'input window, operand 1, single buffered']
    #allocation7 [shape = 's32[1]{0}', space=sflag, size = 0x4, scoped, tag = 'scoped memory for tpu_custom_call.1']
    #allocation8 [shape = 'u8[4096]{0}', space=vmem, size = 0x1000, scoped, tag = 'output window, operand 0, single buffered']
    %8 = vsyncpa [#allocation4], 0
    %9 = vsyncpa [#allocation7], 0
    %10 = vsyncpa [#allocation5], 0
    // Predicated region
    $region2: #{tpu_custom_call.1} parent=1 // pred_check
      _
    $region3: #{tpu_custom_call.1} parent=1 // pred_check_branch
      %12 = sbr.rel (0) target = $region5
    $region4: #{tpu_custom_call.1} parent=1 // pred_region
      %s14 = ssub.s32 1024, 1024
      %15 = vsyncadd [#allocation4], %s14
      %s17 = sshll.u32 [#allocation3], 4
      %s18 = int_to_ptr.vmem [resolvable:$true] %s17
      %20 = dma.hbm_to_vmem [thread:$0]  %s0, 1024, %s18, [#allocation4]
    $region5: #{tpu_custom_call.1} parent=1 // pred_fallthru
      _
    // Predicated region
    $region6: #{tpu_custom_call.1} parent=1 // pred_check
      _
    $region7: #{tpu_custom_call.1} parent=1 // pred_check_branch
      %22 = sbr.rel (0) target = $region9
    $region8: #{tpu_custom_call.1} parent=1 // pred_region
      %s24 = ssub.s32 16384, 16384
      %25 = vsyncadd [#allocation7], %s24
      %s26 = sshll.u32 [#allocation6], 4
      %s27 = int_to_ptr.vmem [resolvable:$true] %s26
      %32 = dma.hbm_to_vmem [thread:$0]  %s1, 16384, %s27, [#allocation7], 128, 128, 8
    $region9: #{tpu_custom_call.1} parent=1 // pred_fallthru
      _
    // Predicated region
    $region10: #{tpu_custom_call.1} parent=1 // pred_check
      _
    $region11: #{tpu_custom_call.1} parent=1 // pred_check_branch
      %34 = sbr.rel (0) target = $region13
    $region12: #{tpu_custom_call.1} parent=1 // pred_region
      _
    $region13: #{tpu_custom_call.1} parent=1 // pred_fallthru
      _
    // Predicated region
    $region14: #{tpu_custom_call.1} parent=1 // pred_check
      _
    $region15: #{tpu_custom_call.1} parent=1 // pred_check_branch
      %36 = sbr.rel (0) target = $region17
    $region16: #{tpu_custom_call.1} parent=1 // pred_region
      %37 = dma.done [#allocation4], 1024
    $region17: #{tpu_custom_call.1} parent=1 // pred_fallthru
      _
    // Predicated region
    $region18: #{tpu_custom_call.1} parent=1 // pred_check
      _
    $region19: #{tpu_custom_call.1} parent=1 // pred_check_branch
      %39 = sbr.rel (0) target = $region21
    $region20: #{tpu_custom_call.1} parent=1 // pred_region
      %40 = dma.done [#allocation7], 16384
    $region21: #{tpu_custom_call.1} parent=1 // pred_fallthru
      _
    %p41 = scmp.eq.s32.totalorder 0, 0
    // Predicated region
    $region22: #{tpu_custom_call.1} parent=1 // pred_check
      %p42 = pneg %p41
    $region23: #{tpu_custom_call.1} parent=1 // pred_check_branch
      %44 = sbr.rel (%p42) target = $region25
    $region24: #{tpu_custom_call.1} parent=1 // pred_region
      %45 = vst [vmem:[#allocation2] sm:$0xff] 0.0
    $region25: #{tpu_custom_call.1} parent=1 // pred_fallthru
      _
    %v46 = vld [vmem:[#allocation2] sm:$0xff]
    %v47 = vld [vmem:[#allocation3] sm:$0xff]
    %v48 = vld [vmem:[#allocation3 + $0x8] sm:$0xff]
    %v49 = vld [vmem:[#allocation3 + $0x10] sm:$0xff]
    %v50 = vld [vmem:[#allocation3 + $0x18] sm:$0xff]
    %v51 = vld [vmem:[#allocation3 + $0x20] sm:$0xff]
    %v52 = vld [vmem:[#allocation3 + $0x28] sm:$0xff]
    %v53 = vld [vmem:[#allocation3 + $0x30] sm:$0xff]
    %v54 = vld [vmem:[#allocation3 + $0x38] sm:$0xff]
    %v55 = vld [vmem:[#allocation6] sm:$0xff]
    %v56 = vld [vmem:[#allocation6 + $0x8] sm:$0xff]
    %v57 = vld [vmem:[#allocation6 + $0x10] sm:$0xff]
    %v58 = vld [vmem:[#allocation6 + $0x18] sm:$0xff]
    %v59 = vld [vmem:[#allocation6 + $0x20] sm:$0xff]
    %v60 = vld [vmem:[#allocation6 + $0x28] sm:$0xff]
    %v61 = vld [vmem:[#allocation6 + $0x30] sm:$0xff]
    %v62 = vld [vmem:[#allocation6 + $0x38] sm:$0xff]
    %v63 = vld [vmem:[#allocation6 + $0x40] sm:$0xff]
    %v64 = vld [vmem:[#allocation6 + $0x48] sm:$0xff]
    %v65 = vld [vmem:[#allocation6 + $0x50] sm:$0xff]
    %v66 = vld [vmem:[#allocation6 + $0x58] sm:$0xff]
    %v67 = vld [vmem:[#allocation6 + $0x60] sm:$0xff]
    %v68 = vld [vmem:[#allocation6 + $0x68] sm:$0xff]
    %v69 = vld [vmem:[#allocation6 + $0x70] sm:$0xff]
    %v70 = vld [vmem:[#allocation6 + $0x78] sm:$0xff]
    %v71 = vld [vmem:[#allocation6 + $0x80] sm:$0xff]
    %v72 = vld [vmem:[#allocation6 + $0x88] sm:$0xff]
    %v73 = vld [vmem:[#allocation6 + $0x90] sm:$0xff]
    %v74 = vld [vmem:[#allocation6 + $0x98] sm:$0xff]
    %v75 = vld [vmem:[#allocation6 + $0xa0] sm:$0xff]
    %v76 = vld [vmem:[#allocation6 + $0xa8] sm:$0xff]
    %v77 = vld [vmem:[#allocation6 + $0xb0] sm:$0xff]
    %v78 = vld [vmem:[#allocation6 + $0xb8] sm:$0xff]
    %v79 = vld [vmem:[#allocation6 + $0xc0] sm:$0xff]
    %v80 = vld [vmem:[#allocation6 + $0xc8] sm:$0xff]
    %v81 = vld [vmem:[#allocation6 + $0xd0] sm:$0xff]
    %v82 = vld [vmem:[#allocation6 + $0xd8] sm:$0xff]
    %v83 = vld [vmem:[#allocation6 + $0xe0] sm:$0xff]
    %v84 = vld [vmem:[#allocation6 + $0xe8] sm:$0xff]
    %v85 = vld [vmem:[#allocation6 + $0xf0] sm:$0xff]
    %v86 = vld [vmem:[#allocation6 + $0xf8] sm:$0xff]
    %v87 = vld [vmem:[#allocation6 + $0x100] sm:$0xff]
    %v88 = vld [vmem:[#allocation6 + $0x108] sm:$0xff]
    %v89 = vld [vmem:[#allocation6 + $0x110] sm:$0xff]
    %v90 = vld [vmem:[#allocation6 + $0x118] sm:$0xff]
    %v91 = vld [vmem:[#allocation6 + $0x120] sm:$0xff]
    %v92 = vld [vmem:[#allocation6 + $0x128] sm:$0xff]
    %v93 = vld [vmem:[#allocation6 + $0x130] sm:$0xff]
    %v94 = vld [vmem:[#allocation6 + $0x138] sm:$0xff]
    %v95 = vld [vmem:[#allocation6 + $0x140] sm:$0xff]
    %v96 = vld [vmem:[#allocation6 + $0x148] sm:$0xff]
    %v97 = vld [vmem:[#allocation6 + $0x150] sm:$0xff]
    %v98 = vld [vmem:[#allocation6 + $0x158] sm:$0xff]
    %v99 = vld [vmem:[#allocation6 + $0x160] sm:$0xff]
    %v100 = vld [vmem:[#allocation6 + $0x168] sm:$0xff]
    %v101 = vld [vmem:[#allocation6 + $0x170] sm:$0xff]
    %v102 = vld [vmem:[#allocation6 + $0x178] sm:$0xff]
    %v103 = vld [vmem:[#allocation6 + $0x180] sm:$0xff]
    %v104 = vld [vmem:[#allocation6 + $0x188] sm:$0xff]
    %v105 = vld [vmem:[#allocation6 + $0x190] sm:$0xff]
    %v106 = vld [vmem:[#allocation6 + $0x198] sm:$0xff]
    %v107 = vld [vmem:[#allocation6 + $0x1a0] sm:$0xff]
    %v108 = vld [vmem:[#allocation6 + $0x1a8] sm:$0xff]
    %v109 = vld [vmem:[#allocation6 + $0x1b0] sm:$0xff]
    %v110 = vld [vmem:[#allocation6 + $0x1b8] sm:$0xff]
    %v111 = vld [vmem:[#allocation6 + $0x1c0] sm:$0xff]
    %v112 = vld [vmem:[#allocation6 + $0x1c8] sm:$0xff]
    %v113 = vld [vmem:[#allocation6 + $0x1d0] sm:$0xff]
    %v114 = vld [vmem:[#allocation6 + $0x1d8] sm:$0xff]
    %v115 = vld [vmem:[#allocation6 + $0x1e0] sm:$0xff]
    %v116 = vld [vmem:[#allocation6 + $0x1e8] sm:$0xff]
    %v117 = vld [vmem:[#allocation6 + $0x1f0] sm:$0xff]
    %v118 = vld [vmem:[#allocation6 + $0x1f8] sm:$0xff]
    %v119 = vld [vmem:[#allocation6 + $0x200] sm:$0xff]
    %v120 = vld [vmem:[#allocation6 + $0x208] sm:$0xff]
    %v121 = vld [vmem:[#allocation6 + $0x210] sm:$0xff]
    %v122 = vld [vmem:[#allocation6 + $0x218] sm:$0xff]
    %v123 = vld [vmem:[#allocation6 + $0x220] sm:$0xff]
    %v124 = vld [vmem:[#allocation6 + $0x228] sm:$0xff]
    %v125 = vld [vmem:[#allocation6 + $0x230] sm:$0xff]
    %v126 = vld [vmem:[#allocation6 + $0x238] sm:$0xff]
    %v127 = vld [vmem:[#allocation6 + $0x240] sm:$0xff]
    %v128 = vld [vmem:[#allocation6 + $0x248] sm:$0xff]
    %v129 = vld [vmem:[#allocation6 + $0x250] sm:$0xff]
    %v130 = vld [vmem:[#allocation6 + $0x258] sm:$0xff]
    %v131 = vld [vmem:[#allocation6 + $0x260] sm:$0xff]
    %v132 = vld [vmem:[#allocation6 + $0x268] sm:$0xff]
    %v133 = vld [vmem:[#allocation6 + $0x270] sm:$0xff]
    %v134 = vld [vmem:[#allocation6 + $0x278] sm:$0xff]
    %v135 = vld [vmem:[#allocation6 + $0x280] sm:$0xff]
    %v136 = vld [vmem:[#allocation6 + $0x288] sm:$0xff]
    %v137 = vld [vmem:[#allocation6 + $0x290] sm:$0xff]
    %v138 = vld [vmem:[#allocation6 + $0x298] sm:$0xff]
    %v139 = vld [vmem:[#allocation6 + $0x2a0] sm:$0xff]
    %v140 = vld [vmem:[#allocation6 + $0x2a8] sm:$0xff]
    %v141 = vld [vmem:[#allocation6 + $0x2b0] sm:$0xff]
    %v142 = vld [vmem:[#allocation6 + $0x2b8] sm:$0xff]
    %v143 = vld [vmem:[#allocation6 + $0x2c0] sm:$0xff]
    %v144 = vld [vmem:[#allocation6 + $0x2c8] sm:$0xff]
    %v145 = vld [vmem:[#allocation6 + $0x2d0] sm:$0xff]
    %v146 = vld [vmem:[#allocation6 + $0x2d8] sm:$0xff]
    %v147 = vld [vmem:[#allocation6 + $0x2e0] sm:$0xff]
    %v148 = vld [vmem:[#allocation6 + $0x2e8] sm:$0xff]
    %v149 = vld [vmem:[#allocation6 + $0x2f0] sm:$0xff]
    %v150 = vld [vmem:[#allocation6 + $0x2f8] sm:$0xff]
    %v151 = vld [vmem:[#allocation6 + $0x300] sm:$0xff]
    %v152 = vld [vmem:[#allocation6 + $0x308] sm:$0xff]
    %v153 = vld [vmem:[#allocation6 + $0x310] sm:$0xff]
    %v154 = vld [vmem:[#allocation6 + $0x318] sm:$0xff]
    %v155 = vld [vmem:[#allocation6 + $0x320] sm:$0xff]
    %v156 = vld [vmem:[#allocation6 + $0x328] sm:$0xff]
    %v157 = vld [vmem:[#allocation6 + $0x330] sm:$0xff]
    %v158 = vld [vmem:[#allocation6 + $0x338] sm:$0xff]
    %v159 = vld [vmem:[#allocation6 + $0x340] sm:$0xff]
    %v160 = vld [vmem:[#allocation6 + $0x348] sm:$0xff]
    %v161 = vld [vmem:[#allocation6 + $0x350] sm:$0xff]
    %v162 = vld [vmem:[#allocation6 + $0x358] sm:$0xff]
    %v163 = vld [vmem:[#allocation6 + $0x360] sm:$0xff]
    %v164 = vld [vmem:[#allocation6 + $0x368] sm:$0xff]
    %v165 = vld [vmem:[#allocation6 + $0x370] sm:$0xff]
    %v166 = vld [vmem:[#allocation6 + $0x378] sm:$0xff]
    %v167 = vld [vmem:[#allocation6 + $0x380] sm:$0xff]
    %v168 = vld [vmem:[#allocation6 + $0x388] sm:$0xff]
    %v169 = vld [vmem:[#allocation6 + $0x390] sm:$0xff]
    %v170 = vld [vmem:[#allocation6 + $0x398] sm:$0xff]
    %v171 = vld [vmem:[#allocation6 + $0x3a0] sm:$0xff]
    %v172 = vld [vmem:[#allocation6 + $0x3a8] sm:$0xff]
    %v173 = vld [vmem:[#allocation6 + $0x3b0] sm:$0xff]
    %v174 = vld [vmem:[#allocation6 + $0x3b8] sm:$0xff]
    %v175 = vld [vmem:[#allocation6 + $0x3c0] sm:$0xff]
    %v176 = vld [vmem:[#allocation6 + $0x3c8] sm:$0xff]
    %v177 = vld [vmem:[#allocation6 + $0x3d0] sm:$0xff]
    %v178 = vld [vmem:[#allocation6 + $0x3d8] sm:$0xff]
    %v179 = vld [vmem:[#allocation6 + $0x3e0] sm:$0xff]
    %v180 = vld [vmem:[#allocation6 + $0x3e8] sm:$0xff]
    %v181 = vld [vmem:[#allocation6 + $0x3f0] sm:$0xff]
    %v182 = vld [vmem:[#allocation6 + $0x3f8] sm:$0xff]
    %183 = vmatprep.subr.mxu0 0.0
    %184 = vmatpush1.msra.mxu0 %v70
    %185 = vmatprep.subr.mxu0 0.0
    %186 = vmatpush1.msra.mxu0 %v69
    %187 = vmatprep.subr.mxu0 0.0
    %188 = vmatpush1.msra.mxu0 %v68
    %189 = vmatprep.subr.mxu0 0.0
    %190 = vmatpush1.msra.mxu0 %v67
    %191 = vmatprep.subr.mxu0 0.0
    %192 = vmatpush1.msra.mxu0 %v66
    %193 = vmatprep.subr.mxu0 0.0
    %194 = vmatpush1.msra.mxu0 %v65
    %195 = vmatprep.subr.mxu0 0.0
    %196 = vmatpush1.msra.mxu0 %v64
    %197 = vmatprep.subr.mxu0 0.0
    %198 = vmatpush1.msra.mxu0 %v63
    %199 = vmatprep.subr.mxu0 0.0
    %200 = vmatpush1.msra.mxu0 %v62
    %201 = vmatprep.subr.mxu0 0.0
    %202 = vmatpush1.msra.mxu0 %v61
    %203 = vmatprep.subr.mxu0 0.0
    %204 = vmatpush1.msra.mxu0 %v60
    %205 = vmatprep.subr.mxu0 0.0
    %206 = vmatpush1.msra.mxu0 %v59
    %207 = vmatprep.subr.mxu0 0.0
    %208 = vmatpush1.msra.mxu0 %v58
    %209 = vmatprep.subr.mxu0 0.0
    %210 = vmatpush1.msra.mxu0 %v57
    %211 = vmatprep.subr.mxu0 0.0
    %212 = vmatpush1.msra.mxu0 %v56
    %213 = vmatprep.subr.mxu0 0.0
    %214 = vmatpush1.msra.mxu0 %v55
    %215 = vmatprep.subr.mxu0 0.0
    %216 = vmatpush2.msra.mxu0 %v86
    %217 = vmatprep.subr.mxu0 0.0
    %218 = vmatpush2.msra.mxu0 %v85
    %219 = vmatprep.subr.mxu0 0.0
    %220 = vmatpush2.msra.mxu0 %v84
    %221 = vmatprep.subr.mxu0 0.0
    %222 = vmatpush2.msra.mxu0 %v83
    %223 = vmatprep.subr.mxu0 0.0
    %224 = vmatpush2.msra.mxu0 %v82
    %225 = vmatprep.subr.mxu0 0.0
    %226 = vmatpush2.msra.mxu0 %v81
    %227 = vmatprep.subr.mxu0 0.0
    %228 = vmatpush2.msra.mxu0 %v80
    %229 = vmatprep.subr.mxu0 0.0
    %230 = vmatpush2.msra.mxu0 %v79
    %231 = vmatprep.subr.mxu0 0.0
    %232 = vmatpush2.msra.mxu0 %v78
    %233 = vmatprep.subr.mxu0 0.0
    %234 = vmatpush2.msra.mxu0 %v77
    %235 = vmatprep.subr.mxu0 0.0
    %236 = vmatpush2.msra.mxu0 %v76
    %237 = vmatprep.subr.mxu0 0.0
    %238 = vmatpush2.msra.mxu0 %v75
    %239 = vmatprep.subr.mxu0 0.0
    %240 = vmatpush2.msra.mxu0 %v74
    %241 = vmatprep.subr.mxu0 0.0
    %242 = vmatpush2.msra.mxu0 %v73
    %243 = vmatprep.subr.mxu0 0.0
    %244 = vmatpush2.msra.mxu0 %v72
    %245 = vmatprep.subr.mxu0 0.0
    %246 = vmatpush2.msra.mxu0 %v71
    %247 = vmatprep.mubr.f32.mxu0 %v48
    %248 = vmatmul.mubr.f32.gmra.mxu0 %v47
    %v249 = vpop.f32.mrf.mxu0
    %v250 = vadd.f32 0.0, %v249
    %v251 = vpop.f32.mrf.mxu0
    %252 = vdwg.mxu0
    %253 = vmatprep.subr.mxu0 0.0
    %254 = vmatpush1.msra.mxu0 %v102
    %255 = vmatprep.subr.mxu0 0.0
    %256 = vmatpush1.msra.mxu0 %v101
    %257 = vmatprep.subr.mxu0 0.0
    %258 = vmatpush1.msra.mxu0 %v100
    %259 = vmatprep.subr.mxu0 0.0
    %260 = vmatpush1.msra.mxu0 %v99
    %261 = vmatprep.subr.mxu0 0.0
    %262 = vmatpush1.msra.mxu0 %v98
    %263 = vmatprep.subr.mxu0 0.0
    %264 = vmatpush1.msra.mxu0 %v97
    %265 = vmatprep.subr.mxu0 0.0
    %266 = vmatpush1.msra.mxu0 %v96
    %267 = vmatprep.subr.mxu0 0.0
    %268 = vmatpush1.msra.mxu0 %v95
    %269 = vmatprep.subr.mxu0 0.0
    %270 = vmatpush1.msra.mxu0 %v94
    %271 = vmatprep.subr.mxu0 0.0
    %272 = vmatpush1.msra.mxu0 %v93
    %273 = vmatprep.subr.mxu0 0.0
    %274 = vmatpush1.msra.mxu0 %v92
    %275 = vmatprep.subr.mxu0 0.0
    %276 = vmatpush1.msra.mxu0 %v91
    %277 = vmatprep.subr.mxu0 0.0
    %278 = vmatpush1.msra.mxu0 %v90
    %279 = vmatprep.subr.mxu0 0.0
    %280 = vmatpush1.msra.mxu0 %v89
    %281 = vmatprep.subr.mxu0 0.0
    %282 = vmatpush1.msra.mxu0 %v88
    %283 = vmatprep.subr.mxu0 0.0
    %284 = vmatpush1.msra.mxu0 %v87
    %285 = vmatprep.subr.mxu0 0.0
    %286 = vmatpush2.msra.mxu0 %v118
    %287 = vmatprep.subr.mxu0 0.0
    %288 = vmatpush2.msra.mxu0 %v117
    %289 = vmatprep.subr.mxu0 0.0
    %290 = vmatpush2.msra.mxu0 %v116
    %291 = vmatprep.subr.mxu0 0.0
    %292 = vmatpush2.msra.mxu0 %v115
    %293 = vmatprep.subr.mxu0 0.0
    %294 = vmatpush2.msra.mxu0 %v114
    %295 = vmatprep.subr.mxu0 0.0
    %296 = vmatpush2.msra.mxu0 %v113
    %297 = vmatprep.subr.mxu0 0.0
    %298 = vmatpush2.msra.mxu0 %v112
    %299 = vmatprep.subr.mxu0 0.0
    %300 = vmatpush2.msra.mxu0 %v111
    %301 = vmatprep.subr.mxu0 0.0
    %302 = vmatpush2.msra.mxu0 %v110
    %303 = vmatprep.subr.mxu0 0.0
    %304 = vmatpush2.msra.mxu0 %v109
    %305 = vmatprep.subr.mxu0 0.0
    %306 = vmatpush2.msra.mxu0 %v108
    %307 = vmatprep.subr.mxu0 0.0
    %308 = vmatpush2.msra.mxu0 %v107
    %309 = vmatprep.subr.mxu0 0.0
    %310 = vmatpush2.msra.mxu0 %v106
    %311 = vmatprep.subr.mxu0 0.0
    %312 = vmatpush2.msra.mxu0 %v105
    %313 = vmatprep.subr.mxu0 0.0
    %314 = vmatpush2.msra.mxu0 %v104
    %315 = vmatprep.subr.mxu0 0.0
    %316 = vmatpush2.msra.mxu0 %v103
    %317 = vmatprep.mubr.f32.mxu0 %v50
    %318 = vmatmul.mubr.f32.gmra.mxu0 %v49
    %v319 = vpop.f32.mrf.mxu0
    %v320 = vadd.f32 %v250, %v319
    %v321 = vpop.f32.mrf.mxu0
    %322 = vdwg.mxu0
    %323 = vmatprep.subr.mxu0 0.0
    %324 = vmatpush1.msra.mxu0 %v134
    %325 = vmatprep.subr.mxu0 0.0
    %326 = vmatpush1.msra.mxu0 %v133
    %327 = vmatprep.subr.mxu0 0.0
    %328 = vmatpush1.msra.mxu0 %v132
    %329 = vmatprep.subr.mxu0 0.0
    %330 = vmatpush1.msra.mxu0 %v131
    %331 = vmatprep.subr.mxu0 0.0
    %332 = vmatpush1.msra.mxu0 %v130
    %333 = vmatprep.subr.mxu0 0.0
    %334 = vmatpush1.msra.mxu0 %v129
    %335 = vmatprep.subr.mxu0 0.0
    %336 = vmatpush1.msra.mxu0 %v128
    %337 = vmatprep.subr.mxu0 0.0
    %338 = vmatpush1.msra.mxu0 %v127
    %339 = vmatprep.subr.mxu0 0.0
    %340 = vmatpush1.msra.mxu0 %v126
    %341 = vmatprep.subr.mxu0 0.0
    %342 = vmatpush1.msra.mxu0 %v125
    %343 = vmatprep.subr.mxu0 0.0
    %344 = vmatpush1.msra.mxu0 %v124
    %345 = vmatprep.subr.mxu0 0.0
    %346 = vmatpush1.msra.mxu0 %v123
    %347 = vmatprep.subr.mxu0 0.0
    %348 = vmatpush1.msra.mxu0 %v122
    %349 = vmatprep.subr.mxu0 0.0
    %350 = vmatpush1.msra.mxu0 %v121
    %351 = vmatprep.subr.mxu0 0.0
    %352 = vmatpush1.msra.mxu0 %v120
    %353 = vmatprep.subr.mxu0 0.0
    %354 = vmatpush1.msra.mxu0 %v119
    %355 = vmatprep.subr.mxu0 0.0
    %356 = vmatpush2.msra.mxu0 %v150
    %357 = vmatprep.subr.mxu0 0.0
    %358 = vmatpush2.msra.mxu0 %v149
    %359 = vmatprep.subr.mxu0 0.0
    %360 = vmatpush2.msra.mxu0 %v148
    %361 = vmatprep.subr.mxu0 0.0
    %362 = vmatpush2.msra.mxu0 %v147
    %363 = vmatprep.subr.mxu0 0.0
    %364 = vmatpush2.msra.mxu0 %v146
    %365 = vmatprep.subr.mxu0 0.0
    %366 = vmatpush2.msra.mxu0 %v145
    %367 = vmatprep.subr.mxu0 0.0
    %368 = vmatpush2.msra.mxu0 %v144
    %369 = vmatprep.subr.mxu0 0.0
    %370 = vmatpush2.msra.mxu0 %v143
    %371 = vmatprep.subr.mxu0 0.0
    %372 = vmatpush2.msra.mxu0 %v142
    %373 = vmatprep.subr.mxu0 0.0
    %374 = vmatpush2.msra.mxu0 %v141
    %375 = vmatprep.subr.mxu0 0.0
    %376 = vmatpush2.msra.mxu0 %v140
    %377 = vmatprep.subr.mxu0 0.0
    %378 = vmatpush2.msra.mxu0 %v139
    %379 = vmatprep.subr.mxu0 0.0
    %380 = vmatpush2.msra.mxu0 %v138
    %381 = vmatprep.subr.mxu0 0.0
    %382 = vmatpush2.msra.mxu0 %v137
    %383 = vmatprep.subr.mxu0 0.0
    %384 = vmatpush2.msra.mxu0 %v136
    %385 = vmatprep.subr.mxu0 0.0
    %386 = vmatpush2.msra.mxu0 %v135
    %387 = vmatprep.mubr.f32.mxu0 %v52
    %388 = vmatmul.mubr.f32.gmra.mxu0 %v51
    %v389 = vpop.f32.mrf.mxu0
    %v390 = vadd.f32 %v320, %v389
    %v391 = vpop.f32.mrf.mxu0
    %392 = vdwg.mxu0
    %393 = vmatprep.subr.mxu0 0.0
    %394 = vmatpush1.msra.mxu0 %v166
    %395 = vmatprep.subr.mxu0 0.0
    %396 = vmatpush1.msra.mxu0 %v165
    %397 = vmatprep.subr.mxu0 0.0
    %398 = vmatpush1.msra.mxu0 %v164
    %399 = vmatprep.subr.mxu0 0.0
    %400 = vmatpush1.msra.mxu0 %v163
    %401 = vmatprep.subr.mxu0 0.0
    %402 = vmatpush1.msra.mxu0 %v162
    %403 = vmatprep.subr.mxu0 0.0
    %404 = vmatpush1.msra.mxu0 %v161
    %405 = vmatprep.subr.mxu0 0.0
    %406 = vmatpush1.msra.mxu0 %v160
    %407 = vmatprep.subr.mxu0 0.0
    %408 = vmatpush1.msra.mxu0 %v159
    %409 = vmatprep.subr.mxu0 0.0
    %410 = vmatpush1.msra.mxu0 %v158
    %411 = vmatprep.subr.mxu0 0.0
    %412 = vmatpush1.msra.mxu0 %v157
    %413 = vmatprep.subr.mxu0 0.0
    %414 = vmatpush1.msra.mxu0 %v156
    %415 = vmatprep.subr.mxu0 0.0
    %416 = vmatpush1.msra.mxu0 %v155
    %417 = vmatprep.subr.mxu0 0.0
    %418 = vmatpush1.msra.mxu0 %v154
    %419 = vmatprep.subr.mxu0 0.0
    %420 = vmatpush1.msra.mxu0 %v153
    %421 = vmatprep.subr.mxu0 0.0
    %422 = vmatpush1.msra.mxu0 %v152
    %423 = vmatprep.subr.mxu0 0.0
    %424 = vmatpush1.msra.mxu0 %v151
    %425 = vmatprep.subr.mxu0 0.0
    %426 = vmatpush2.msra.mxu0 %v182
    %427 = vmatprep.subr.mxu0 0.0
    %428 = vmatpush2.msra.mxu0 %v181
    %429 = vmatprep.subr.mxu0 0.0
    %430 = vmatpush2.msra.mxu0 %v180
    %431 = vmatprep.subr.mxu0 0.0
    %432 = vmatpush2.msra.mxu0 %v179
    %433 = vmatprep.subr.mxu0 0.0
    %434 = vmatpush2.msra.mxu0 %v178
    %435 = vmatprep.subr.mxu0 0.0
    %436 = vmatpush2.msra.mxu0 %v177
    %437 = vmatprep.subr.mxu0 0.0
    %438 = vmatpush2.msra.mxu0 %v176
    %439 = vmatprep.subr.mxu0 0.0
    %440 = vmatpush2.msra.mxu0 %v175
    %441 = vmatprep.subr.mxu0 0.0
    %442 = vmatpush2.msra.mxu0 %v174
    %443 = vmatprep.subr.mxu0 0.0
    %444 = vmatpush2.msra.mxu0 %v173
    %445 = vmatprep.subr.mxu0 0.0
    %446 = vmatpush2.msra.mxu0 %v172
    %447 = vmatprep.subr.mxu0 0.0
    %448 = vmatpush2.msra.mxu0 %v171
    %449 = vmatprep.subr.mxu0 0.0
    %450 = vmatpush2.msra.mxu0 %v170
    %451 = vmatprep.subr.mxu0 0.0
    %452 = vmatpush2.msra.mxu0 %v169
    %453 = vmatprep.subr.mxu0 0.0
    %454 = vmatpush2.msra.mxu0 %v168
    %455 = vmatprep.subr.mxu0 0.0
    %456 = vmatpush2.msra.mxu0 %v167
    %457 = vmatprep.mubr.f32.mxu0 %v54
    %458 = vmatmul.mubr.f32.gmra.mxu0 %v53
    %v459 = vpop.f32.mrf.mxu0
    %v460 = vadd.f32 %v390, %v459
    %v461 = vpop.f32.mrf.mxu0
    %462 = vdwg.mxu0
    %v463 = vadd.f32 %v46, %v460
    %464 = vst [vmem:[#allocation2] sm:$0xff] %v463
    // Predicated region
    $region26: #{tpu_custom_call.1} parent=1 // pred_check
      %p465 = pneg %p41
    $region27: #{tpu_custom_call.1} parent=1 // pred_check_branch
      %467 = sbr.rel (%p465) target = $region29
    $region28: #{tpu_custom_call.1} parent=1 // pred_region
      %v468 = vld [vmem:[#allocation2] sm:$0xff]
      %v469 = vld [vmem:[%s2] sm:$0x1]
      %v471 = vlaneseq
      %v472 = vshrl.u32 %v471, 7
      %v473 = vsub.s32 0, %v472
      %v474 = vrot.slane %v469, %v473
      %v476 = vadd.f32 %v468, %v474
      %v477 = vmul.f32 %v476, %v476
      %478 = vadd.xlane.f32.xlu0 %v477
      %v479 = vpop.xlane.xlu0 %478
      %v480 = vmax.f32 %v479, 1e-24
      %v481 = vrsqrt.pop %v480
      %v482 = vmul.f32 %v476, %v481
      %483 = vst [vmem:[#allocation8] sm:$0xff] %v482
    $region29: #{tpu_custom_call.1} parent=1 // pred_fallthru
      _
    // Predicated region
    $region30: #{tpu_custom_call.1} parent=1 // pred_check
      _
    $region31: #{tpu_custom_call.1} parent=1 // pred_check_branch
      %485 = sbr.rel (0) target = $region33
    $region32: #{tpu_custom_call.1} parent=1 // pred_region
      %s487 = ssub.s32 128, 128
      %488 = vsyncadd [#allocation5], %s487
      %s490 = sshll.u32 [#allocation8], 4
      %s491 = int_to_ptr.vmem [resolvable:$true] %s490
      %493 = dma.vmem_to_hbm [thread:$0]  %s491, 128, %s3, [#allocation5]
    $region33: #{tpu_custom_call.1} parent=1 // pred_fallthru
      _
    // Predicated region
    $region34: #{tpu_custom_call.1} parent=1 // pred_check
      _
    $region35: #{tpu_custom_call.1} parent=1 // pred_check_branch
      %495 = sbr.rel (0) target = $region37
    $region36: #{tpu_custom_call.1} parent=1 // pred_region
      %496 = dma.done [#allocation5], 128
    $region37: #{tpu_custom_call.1} parent=1 // pred_fallthru
      _
    %497 = vsyncpa [#allocation4], 1
    %498 = vsyncpa [#allocation7], 1
    %499 = vsyncpa [#allocation5], 1

</llo_original>
